<compile_context>
chip_gen: v7x
topology: tpu7x:2x2x1
jax: 0.10.0
libtpu: 0.0.40
codegen_flags: <defaults>
</compile_context>

<pallas_src>
import jax
import jax.numpy as jnp
from jax.experimental import pallas as pl
from jax.experimental.pallas import tpu as pltpu

NEG_SLOPE = 0.01  # PyTorch nn.LeakyReLU default negative_slope


def _round_up(x, m):
    return ((x + m - 1) // m) * m


# --------------------------------- kernel -----------------------------------
def ann7_kernel(x_ref, w1_ref, b1_ref, w2_ref, b2_ref, w3_ref, b3_ref, o_ref):
    """x_ref: (TB, NB) compute dtype; w1_ref: (NB, H1) compute dtype (linterp folded in);
    w2/w3/biases f32.  Output block: (TB, C) f32."""

    def lrelu(z):
        return jnp.where(z >= 0.0, z, NEG_SLOPE * z)

    # fc1 (interp pre-folded into the weight) + LeakyReLU, f32 accumulation on the MXU.
    h = jnp.dot(x_ref[...], w1_ref[...], preferred_element_type=jnp.float32)
    h = lrelu(h + b1_ref[...])
    # fc2 + LeakyReLU
    h = jnp.dot(h, w2_ref[...], preferred_element_type=jnp.float32)
    h = lrelu(h + b2_ref[...])
    # fc3 + LeakyReLU
    h = jnp.dot(h, w3_ref[...], preferred_element_type=jnp.float32)
    h = lrelu(h + b3_ref[...])

    o_ref[...] = h.astype(o_ref.dtype)


# ------------------------------ host wrapper --------------------------------
def build_interp_matrix(indices, nb):
    """Dense (NB, T) matrix equivalent to the linterp gather (with index clamping)."""
    t = indices.shape[0]
    pos = indices.astype(jnp.float32) * jnp.float32(nb - 1)
    left = jnp.clip(jnp.floor(pos).astype(jnp.int32), 0, nb - 1)
    frac = pos - left.astype(jnp.float32)
    right = jnp.clip(left + 1, 0, nb - 1)
    cols = jnp.arange(t)
    m = jnp.zeros((nb, t), jnp.float32)
    m = m.at[left, cols].add(1.0 - frac)
    m = m.at[right, cols].add(frac)
    return m


def ann7_forward(x_spectra, indices, params, *, block_rows=512,
                 compute_dtype=jnp.bfloat16):
    """x_spectra: (B, NB) spectra held by the linterp module.
       indices:   (T,) learnable fractional positions.
       params:    (w1, b1, w2, b2, w3, b3) of the fc stack."""
    w1, b1, w2, b2, w3, b3 = params
    B, NB = x_spectra.shape
    H1 = w1.shape[1]
    H2 = w2.shape[1]
    C = w3.shape[1]

    # Fold linterp into fc1's weight (matmul associativity): x @ (interp @ w1) + b1.
    interp = build_interp_matrix(indices, NB)                                  # (NB, T)
    w1_eff = jnp.dot(interp, w1.astype(jnp.float32)).astype(compute_dtype)     # (NB, H1)

    x = x_spectra.astype(compute_dtype)

    # Batch tiling: TB rows per grid step (multiple of 8 sublanes); pad B if needed.
    TB = min(int(block_rows), _round_up(B, 8))
    TB = _round_up(TB, 8)
    B_pad = _round_up(B, TB)
    if B_pad != B:
        x = jnp.pad(x, ((0, B_pad - B), (0, 0)))

    const = lambda shape: pl.BlockSpec(shape, lambda i: (0, 0))

    out = pl.pallas_call(
        ann7_kernel,
        out_shape=jax.ShapeDtypeStruct((B_pad, C), jnp.float32),
        grid=(B_pad // TB,),
        in_specs=[
            pl.BlockSpec((TB, NB), lambda i: (i, 0)),   # x tile: streamed / pipelined
            const((NB, H1)), const((1, H1)),            # fused interp+fc1 weight, b1
            const((H1, H2)), const((1, H2)),            # fc2
            const((H2, C)), const((1, C)),              # fc3
        ],
        out_specs=pl.BlockSpec((TB, C), lambda i: (i, 0)),
        compiler_params=pltpu.CompilerParams(
            dimension_semantics=("parallel",)),
    )(x,
      w1_eff, b1.reshape(1, H1).astype(jnp.float32),
      w2.astype(jnp.float32), b2.reshape(1, H2).astype(jnp.float32),
      w3.astype(jnp.float32), b3.reshape(1, C).astype(jnp.float32))

    out = out[:B]
    if C == 1:                       # class_size == 1 -> flatten, as in the module
        out = out.reshape(-1)
    return out


# -------------------- deterministic parameter construction ------------------
def make_params(key, target_size, class_size, structure=(128, 64)):
    dims = [target_size] + list(structure) + [class_size]
    params = []
    for i in range(len(dims) - 1):
        key, kw, kb = jax.random.split(key, 3)
        bound = 1.0 / jnp.sqrt(jnp.float32(dims[i]))     # PyTorch Linear-style init
        w = jax.random.uniform(kw, (dims[i], dims[i + 1]), jnp.float32, -bound, bound)
        b = jax.random.uniform(kb, (dims[i + 1],), jnp.float32, -bound, bound)
        params += [w, b]
    return tuple(params)


def make_indices(target_size):
    init_vals = jnp.linspace(0.001, 0.99, target_size + 2, dtype=jnp.float32)
    return init_vals[1:target_size + 1]


# ------------------------------ pure-JAX reference --------------------------
def ref_forward(x_spectra, indices, params):
    w1, b1, w2, b2, w3, b3 = params
    NB = x_spectra.shape[1]
    pos = indices * (NB - 1)
    left = jnp.clip(jnp.floor(pos).astype(jnp.int32), 0, NB - 1)
    frac = (pos - left.astype(jnp.float32))[None, :]
    right = jnp.clip(left + 1, 0, NB - 1)
    h = x_spectra[:, left] * (1.0 - frac) + x_spectra[:, right] * frac
    for w, b in ((w1, b1), (w2, b2), (w3, b3)):
        z = h @ w + b
        h = jnp.where(z >= 0.0, z, NEG_SLOPE * z)
    if w3.shape[1] == 1:
        h = h.reshape(-1)
    return h


if __name__ == "__main__":
    key = jax.random.PRNGKey(0)
    k_x, k_p, k_x2, k_p2 = jax.random.split(key, 4)

    # --- config 1: class_size == 1 (flattened output), single tile ---
    B, NB = 8, 64
    target_size, class_size = 8, 1
    x_spectra = jax.random.normal(k_x, (B, NB), jnp.float32)
    indices = make_indices(target_size)
    params = make_params(k_p, target_size, class_size)

    out = jax.block_until_ready(ann7_forward(x_spectra, indices, params))
    ref = ref_forward(x_spectra, indices, params)
    assert out.shape == (B,), out.shape
    # bf16 streaming of x / W_eff with f32 accumulation -> loosened tolerance.
    assert jnp.allclose(out, ref, atol=2e-2, rtol=2e-2), (out, ref)

    # --- config 2: multi-tile grid + batch padding + class_size > 1 ---
    B2, NB2, T2, C2 = 20, 64, 8, 3
    x2 = jax.random.normal(k_x2, (B2, NB2), jnp.float32)
    idx2 = make_indices(T2)
    params2 = make_params(k_p2, T2, C2)

    out2 = jax.block_until_ready(ann7_forward(x2, idx2, params2, block_rows=16))
    ref2 = ref_forward(x2, idx2, params2)
    assert out2.shape == (B2, C2), out2.shape
    assert jnp.allclose(out2, ref2, atol=2e-2, rtol=2e-2), (out2, ref2)

    print("KERNEL_OK")
</pallas_src>

<mosaic_0001>
module attributes {stable_mosaic.version = 11 : i64} {
  func.func @ann7_kernel(%arg0: i32, %arg1: memref<8x64xbf16, #tpu.memory_space<vmem>>, %arg2: memref<64x128xbf16, #tpu.memory_space<vmem>>, %arg3: memref<1x128xf32, #tpu.memory_space<vmem>>, %arg4: memref<128x64xf32, #tpu.memory_space<vmem>>, %arg5: memref<1x64xf32, #tpu.memory_space<vmem>>, %arg6: memref<64x1xf32, #tpu.memory_space<vmem>>, %arg7: memref<1x1xf32, #tpu.memory_space<vmem>>, %arg8: memref<8x1xf32, #tpu.memory_space<vmem>>) attributes {dimension_semantics = [#tpu.dimension_semantics<parallel>], iteration_bounds = array<i64: 1>, scalar_prefetch = 0 : i64, scratch_operands = 0 : i64, tpu.core_type = #tpu.core_type<tc>, window_params = [{transform_indices = @transform_0, window_bounds = array<i64: 8, 64>}, {pipeline_mode = #tpu.pipeline_mode<synchronous>, transform_indices = @transform_1, window_bounds = array<i64: 64, 128>}, {pipeline_mode = #tpu.pipeline_mode<synchronous>, transform_indices = @transform_2, window_bounds = array<i64: 1, 128>}, {pipeline_mode = #tpu.pipeline_mode<synchronous>, transform_indices = @transform_3, window_bounds = array<i64: 128, 64>}, {pipeline_mode = #tpu.pipeline_mode<synchronous>, transform_indices = @transform_4, window_bounds = array<i64: 1, 64>}, {pipeline_mode = #tpu.pipeline_mode<synchronous>, transform_indices = @transform_5, window_bounds = array<i64: 64, 1>}, {pipeline_mode = #tpu.pipeline_mode<synchronous>, transform_indices = @transform_6, window_bounds = array<i64: 1, 1>}, {transform_indices = @transform_7, window_bounds = array<i64: 8, 1>}]} {
    %c0 = arith.constant 0 : index
    %c0_0 = arith.constant 0 : index
    %0 = vector.load %arg1[%c0, %c0_0] : memref<8x64xbf16, #tpu.memory_space<vmem>>, vector<8x64xbf16>
    %c0_1 = arith.constant 0 : index
    %c0_2 = arith.constant 0 : index
    %1 = vector.load %arg2[%c0_1, %c0_2] : memref<64x128xbf16, #tpu.memory_space<vmem>>, vector<64x128xbf16>
    %cst = arith.constant dense<0.000000e+00> : vector<8x128xf32>
    %2 = tpu.matmul %0, %1, %cst {dimension_numbers = #tpu.dot_dimension_numbers<[1], [0], [0], [1], [0, 0, 1, 1], [], []>} : vector<8x64xbf16>, vector<64x128xbf16>, vector<8x128xf32> -> vector<8x128xf32>
    %c0_3 = arith.constant 0 : index
    %c0_4 = arith.constant 0 : index
    %3 = vector.load %arg3[%c0_3, %c0_4] : memref<1x128xf32, #tpu.memory_space<vmem>>, vector<1x128xf32>
    %4 = vector.broadcast %3 : vector<1x128xf32> to vector<8x128xf32>
    %5 = arith.addf %2, %4 : vector<8x128xf32>
    %cst_5 = arith.constant 0.000000e+00 : f32
    %6 = vector.broadcast %cst_5 : f32 to vector<8x128xf32>
    %7 = arith.cmpf oge, %5, %6 : vector<8x128xf32>
    %cst_6 = arith.constant 0.00999999977 : f32
    %8 = vector.broadcast %cst_6 : f32 to vector<8x128xf32>
    %9 = arith.mulf %8, %5 : vector<8x128xf32>
    %10 = arith.select %7, %5, %9 : vector<8x128xi1>, vector<8x128xf32>
    %c0_7 = arith.constant 0 : index
    %c0_8 = arith.constant 0 : index
    %11 = vector.load %arg4[%c0_7, %c0_8] : memref<128x64xf32, #tpu.memory_space<vmem>>, vector<128x64xf32>
    %cst_9 = arith.constant dense<0.000000e+00> : vector<8x64xf32>
    %12 = tpu.matmul %10, %11, %cst_9 {dimension_numbers = #tpu.dot_dimension_numbers<[1], [0], [0], [1], [0, 0, 1, 1], [], []>} : vector<8x128xf32>, vector<128x64xf32>, vector<8x64xf32> -> vector<8x64xf32>
    %c0_10 = arith.constant 0 : index
    %c0_11 = arith.constant 0 : index
    %13 = vector.load %arg5[%c0_10, %c0_11] : memref<1x64xf32, #tpu.memory_space<vmem>>, vector<1x64xf32>
    %14 = vector.broadcast %13 : vector<1x64xf32> to vector<8x64xf32>
    %15 = arith.addf %12, %14 : vector<8x64xf32>
    %cst_12 = arith.constant 0.000000e+00 : f32
    %16 = vector.broadcast %cst_12 : f32 to vector<8x64xf32>
    %17 = arith.cmpf oge, %15, %16 : vector<8x64xf32>
    %cst_13 = arith.constant 0.00999999977 : f32
    %18 = vector.broadcast %cst_13 : f32 to vector<8x64xf32>
    %19 = arith.mulf %18, %15 : vector<8x64xf32>
    %20 = arith.select %17, %15, %19 : vector<8x64xi1>, vector<8x64xf32>
    %c0_14 = arith.constant 0 : index
    %c0_15 = arith.constant 0 : index
    %21 = vector.load %arg6[%c0_14, %c0_15] : memref<64x1xf32, #tpu.memory_space<vmem>>, vector<64x1xf32>
    %cst_16 = arith.constant dense<0.000000e+00> : vector<8x1xf32>
    %22 = tpu.matmul %20, %21, %cst_16 {dimension_numbers = #tpu.dot_dimension_numbers<[1], [0], [0], [1], [0, 0, 1, 1], [], []>} : vector<8x64xf32>, vector<64x1xf32>, vector<8x1xf32> -> vector<8x1xf32>
    %c0_17 = arith.constant 0 : index
    %c0_18 = arith.constant 0 : index
    %23 = vector.load %arg7[%c0_17, %c0_18] : memref<1x1xf32, #tpu.memory_space<vmem>>, vector<1x1xf32>
    %24 = vector.broadcast %23 : vector<1x1xf32> to vector<8x1xf32>
    %25 = arith.addf %22, %24 : vector<8x1xf32>
    %cst_19 = arith.constant 0.000000e+00 : f32
    %26 = vector.broadcast %cst_19 : f32 to vector<8x1xf32>
    %27 = arith.cmpf oge, %25, %26 : vector<8x1xf32>
    %cst_20 = arith.constant 0.00999999977 : f32
    %28 = vector.broadcast %cst_20 : f32 to vector<8x1xf32>
    %29 = arith.mulf %28, %25 : vector<8x1xf32>
    %30 = arith.select %27, %25, %29 : vector<8x1xi1>, vector<8x1xf32>
    %c0_21 = arith.constant 0 : index
    %c0_22 = arith.constant 0 : index
    %31 = vector.load %arg8[%c0_21, %c0_22] : memref<8x1xf32, #tpu.memory_space<vmem>>, vector<8x1xf32>
    tpu.vector_store %arg8[%c0_21, %c0_22], %30 {strides = array<i32>} : memref<8x1xf32, #tpu.memory_space<vmem>>, vector<8x1xf32>,
    return
  }
  func.func @transform_0(%arg0: i32) -> (i32, i32) {
    %c0_i32 = arith.constant 0 : i32
    %c0_i32_0 = arith.constant 0 : i32
    return %arg0, %c0_i32 : i32, i32
  }
  func.func @transform_1(%arg0: i32) -> (i32, i32) {
    %c0_i32 = arith.constant 0 : i32
    %c0_i32_0 = arith.constant 0 : i32
    %c0_i32_1 = arith.constant 0 : i32
    return %c0_i32, %c0_i32_0 : i32, i32
  }
  func.func @transform_2(%arg0: i32) -> (i32, i32) {
    %c0_i32 = arith.constant 0 : i32
    %c0_i32_0 = arith.constant 0 : i32
    %c0_i32_1 = arith.constant 0 : i32
    return %c0_i32, %c0_i32_0 : i32, i32
  }
  func.func @transform_3(%arg0: i32) -> (i32, i32) {
    %c0_i32 = arith.constant 0 : i32
    %c0_i32_0 = arith.constant 0 : i32
    %c0_i32_1 = arith.constant 0 : i32
    return %c0_i32, %c0_i32_0 : i32, i32
  }
  func.func @transform_4(%arg0: i32) -> (i32, i32) {
    %c0_i32 = arith.constant 0 : i32
    %c0_i32_0 = arith.constant 0 : i32
    %c0_i32_1 = arith.constant 0 : i32
    return %c0_i32, %c0_i32_0 : i32, i32
  }
  func.func @transform_5(%arg0: i32) -> (i32, i32) {
    %c0_i32 = arith.constant 0 : i32
    %c0_i32_0 = arith.constant 0 : i32
    %c0_i32_1 = arith.constant 0 : i32
    return %c0_i32, %c0_i32_0 : i32, i32
  }
  func.func @transform_6(%arg0: i32) -> (i32, i32) {
    %c0_i32 = arith.constant 0 : i32
    %c0_i32_0 = arith.constant 0 : i32
    %c0_i32_1 = arith.constant 0 : i32
    return %c0_i32, %c0_i32_0 : i32, i32
  }
  func.func @transform_7(%arg0: i32) -> (i32, i32) {
    %c0_i32 = arith.constant 0 : i32
    %c0_i32_0 = arith.constant 0 : i32
    return %arg0, %c0_i32 : i32, i32
  }
}

</mosaic_0001>

<llo_original>
// kernel: tpu_custom_call.1
$region0: #{tpu_custom_call.1}
  #allocation0 [shape = 'u32[]', space=smem, size = 0x4, offset = 0x4, fixed_abs, tag = 'smem constant byte address 0x4 - core index']
  #allocation1 [shape = 'u32[144,128]{1,0:T(1,128)}', space=vmem, size = 0x12000, scoped, tag = 'internal scratch']
  #allocation2 [shape = 'f32[1,1]{1,0:T(1,128)S(1)}', space=vmem, size = 0x200, scoped, tag = 'scoped memory for tpu_custom_call.1']
  %s0 = inlined_call_operand.vmem [shape: bf16[8,64], index: 0, kind: input, shape index: {}]
  %s1 = inlined_call_operand.vmem [shape: bf16[64,128], index: 1, kind: input, shape index: {}]
  %s2 = inlined_call_operand.vmem [shape: f32[1,128], index: 2, kind: input, shape index: {}]
  %s3 = inlined_call_operand.vmem [shape: f32[128,64], index: 3, kind: input, shape index: {}]
  %s4 = inlined_call_operand.vmem [shape: f32[1,64], index: 4, kind: input, shape index: {}]
  %s5 = inlined_call_operand.vmem [shape: f32[64,1], index: 5, kind: input, shape index: {}]
  %s6 = inlined_call_operand.<no memory space> [shape: f32[1,1], index: 6, kind: input, shape index: {}]
  %s7 = inlined_call_operand.vmem [shape: f32[8,1], index: 7, kind: output, shape index: {}]
  %s8 = sld [smem:[#allocation0]]
  $region38: #{tpu_custom_call.1} parent=0
    _
  %s10 = ssub.s32 1, %s8
  %s11 = scalar_select 0, %s10, %s8
  %v12 = vstv %s6
  %13 = vst [vmem:[#allocation2] sm:$0x1] %v12
  // Predicated region
  $region2: #{tpu_custom_call.1} parent=0 // pred_check
    _
  $region3: #{tpu_custom_call.1} parent=0 // pred_check_branch
    %15 = sbr.rel (0) target = $region5
  $region4: #{tpu_custom_call.1} parent=0 // pred_region
    _
  $region5: #{tpu_custom_call.1} parent=0 // pred_fallthru
    _
  // Predicated region
  $region6: #{tpu_custom_call.1} parent=0 // pred_check
    _
  $region7: #{tpu_custom_call.1} parent=0 // pred_check_branch
    %17 = sbr.rel (0) target = $region9
  $region8: #{tpu_custom_call.1} parent=0 // pred_region
    _
  $region9: #{tpu_custom_call.1} parent=0 // pred_fallthru
    _
  // Predicated region
  $region10: #{tpu_custom_call.1} parent=0 // pred_check
    _
  $region11: #{tpu_custom_call.1} parent=0 // pred_check_branch
    %19 = sbr.rel (0) target = $region13
  $region12: #{tpu_custom_call.1} parent=0 // pred_region
    _
  $region13: #{tpu_custom_call.1} parent=0 // pred_fallthru
    _
  // Predicated region
  $region14: #{tpu_custom_call.1} parent=0 // pred_check
    _
  $region15: #{tpu_custom_call.1} parent=0 // pred_check_branch
    %21 = sbr.rel (0) target = $region17
  $region16: #{tpu_custom_call.1} parent=0 // pred_region
    _
  $region17: #{tpu_custom_call.1} parent=0 // pred_fallthru
    _
  // Predicated region
  $region18: #{tpu_custom_call.1} parent=0 // pred_check
    _
  $region19: #{tpu_custom_call.1} parent=0 // pred_check_branch
    %23 = sbr.rel (0) target = $region21
  $region20: #{tpu_custom_call.1} parent=0 // pred_region
    _
  $region21: #{tpu_custom_call.1} parent=0 // pred_fallthru
    _
  // Predicated region
  $region22: #{tpu_custom_call.1} parent=0 // pred_check
    _
  $region23: #{tpu_custom_call.1} parent=0 // pred_check_branch
    %25 = sbr.rel (0) target = $region25
  $region24: #{tpu_custom_call.1} parent=0 // pred_region
    _
  $region25: #{tpu_custom_call.1} parent=0 // pred_fallthru
    _
  // Predicated region
  $region26: #{tpu_custom_call.1} parent=0 // pred_check
    _
  $region27: #{tpu_custom_call.1} parent=0 // pred_check_branch
    %27 = sbr.rel (0) target = $region29
  $region28: #{tpu_custom_call.1} parent=0 // pred_region
    _
  $region29: #{tpu_custom_call.1} parent=0 // pred_fallthru
    _
  %v29 = vld [vmem:[%s0] sm:$0xf]
  %v30 = vld [vmem:[%s1] sm:$0xf]
  %v31 = vld [vmem:[%s1 + $0x4] sm:$0xf]
  %v32 = vld [vmem:[%s1 + $0x8] sm:$0xf]
  %v33 = vld [vmem:[%s1 + $0xc] sm:$0xf]
  %v34 = vld [vmem:[%s1 + $0x10] sm:$0xf]
  %v35 = vld [vmem:[%s1 + $0x14] sm:$0xf]
  %v36 = vld [vmem:[%s1 + $0x18] sm:$0xf]
  %v37 = vld [vmem:[%s1 + $0x1c] sm:$0xf]
  %v38 = vld [vmem:[%s2] sm:$0x1]
  %v40 = vlaneseq
  %v41 = vshrl.u32 %v40, 7
  %v42 = vsub.s32 0, %v41
  %v43 = vrot.slane %v38, %v42
  %v53 = vunpack.c.l.b16 %v30
  %v54 = vunpack.c.l.b16 %v31
  %v55 = vunpack.c.l.b16 %v32
  %v56 = vunpack.c.l.b16 %v33
  %v57 = vunpack.c.l.b16 %v34
  %v58 = vunpack.c.l.b16 %v35
  %v59 = vunpack.c.l.b16 %v36
  %v60 = vunpack.c.l.b16 %v37
  %v61 = vpack.c.b16 %v54, %v53
  %v62 = vpack.c.b16 %v56, %v55
  %v63 = vpack.c.b16 %v58, %v57
  %v64 = vpack.c.b16 %v60, %v59
  %vm69 = vcmask 523264
  %v71 = vsel %vm69, %v29, 0
  %73 = vmatprep.subr.bf16.mxu0 0
  %74 = vmatpush1.bf16.msra.mxu0 %v61
  %75 = vmatprep.subr.bf16.mxu0 0
  %76 = vmatpush1.bf16.msra.mxu0 %v62
  %77 = vmatprep.subr.bf16.mxu0 0
  %78 = vmatpush1.bf16.msra.mxu0 %v63
  %79 = vmatprep.subr.bf16.mxu0 0
  %80 = vmatpush1.bf16.msra.mxu0 %v64
  %81 = vmatprep.subr.bf16.mxu0 0
  %82 = vmatpush1.bf16.msra.mxu0 0
  %83 = vmatprep.subr.bf16.mxu0 0
  %84 = vmatpush1.bf16.msra.mxu0 0
  %85 = vmatprep.subr.bf16.mxu0 0
  %86 = vmatpush1.bf16.msra.mxu0 0
  %87 = vmatprep.subr.bf16.mxu0 0
  %88 = vmatpush1.bf16.msra.mxu0 0
  %89 = vmatprep.subr.bf16.mxu0 0
  %90 = vmatpush1.bf16.msra.mxu0 0
  %91 = vmatprep.subr.bf16.mxu0 0
  %92 = vmatpush1.bf16.msra.mxu0 0
  %93 = vmatprep.subr.bf16.mxu0 0
  %94 = vmatpush1.bf16.msra.mxu0 0
  %95 = vmatprep.subr.bf16.mxu0 0
  %96 = vmatpush1.bf16.msra.mxu0 0
  %97 = vmatprep.subr.bf16.mxu0 0
  %98 = vmatpush1.bf16.msra.mxu0 0
  %99 = vmatprep.subr.bf16.mxu0 0
  %100 = vmatpush1.bf16.msra.mxu0 0
  %101 = vmatprep.subr.bf16.mxu0 0
  %102 = vmatpush1.bf16.msra.mxu0 0
  %103 = vmatprep.subr.bf16.mxu0 0
  %104 = vmatpush1.bf16.msra.mxu0 0
  %105 = vmatprep.mubr.bf16.mxu0 0
  %106 = vmatmul.mubr.bf16.gmra.mrb[0].mxu0 %v71
  %v107 = vpop.f32.mrb[0].mxu0
  %v108 = vadd.f32 %v43, %v107
  %v109 = vpop.f32.mrb[0].mxu0
  %v110 = vpop.f32.mrb[0].mxu0
  %v111 = vpop.f32.mrb[0].mxu0
  %112 = vdwg.mxu0
  %vm113 = vcmp.ge.f32.partialorder %v108, 0.0
  %v114 = vmul.f32 %v108, 0.01
  %v115 = vsel %vm113, %v108, %v114
  %v116 = vld [vmem:[%s3] sm:$0xff]
  %v117 = vld [vmem:[%s3 + $0x8] sm:$0xff]
  %v118 = vld [vmem:[%s3 + $0x10] sm:$0xff]
  %v119 = vld [vmem:[%s3 + $0x18] sm:$0xff]
  %v120 = vld [vmem:[%s3 + $0x20] sm:$0xff]
  %v121 = vld [vmem:[%s3 + $0x28] sm:$0xff]
  %v122 = vld [vmem:[%s3 + $0x30] sm:$0xff]
  %v123 = vld [vmem:[%s3 + $0x38] sm:$0xff]
  %v124 = vld [vmem:[%s3 + $0x40] sm:$0xff]
  %v125 = vld [vmem:[%s3 + $0x48] sm:$0xff]
  %v126 = vld [vmem:[%s3 + $0x50] sm:$0xff]
  %v127 = vld [vmem:[%s3 + $0x58] sm:$0xff]
  %v128 = vld [vmem:[%s3 + $0x60] sm:$0xff]
  %v129 = vld [vmem:[%s3 + $0x68] sm:$0xff]
  %v130 = vld [vmem:[%s3 + $0x70] sm:$0xff]
  %v131 = vld [vmem:[%s3 + $0x78] sm:$0xff]
  %v132 = vld [vmem:[%s4] sm:$0x1]
  %v134 = vlaneseq
  %v135 = vshrl.u32 %v134, 7
  %v136 = vsub.s32 0, %v135
  %v137 = vrot.slane %v132, %v136
  %139 = vmatprep.subr.mxu0 0.0
  %140 = vmatpush1.msra.mxu0 %v116
  %141 = vmatprep.subr.mxu0 0.0
  %142 = vmatpush1.msra.mxu0 %v117
  %143 = vmatprep.subr.mxu0 0.0
  %144 = vmatpush1.msra.mxu0 %v118
  %145 = vmatprep.subr.mxu0 0.0
  %146 = vmatpush1.msra.mxu0 %v119
  %147 = vmatprep.subr.mxu0 0.0
  %148 = vmatpush1.msra.mxu0 %v120
  %149 = vmatprep.subr.mxu0 0.0
  %150 = vmatpush1.msra.mxu0 %v121
  %151 = vmatprep.subr.mxu0 0.0
  %152 = vmatpush1.msra.mxu0 %v122
  %153 = vmatprep.subr.mxu0 0.0
  %154 = vmatpush1.msra.mxu0 %v123
  %155 = vmatprep.subr.mxu0 0.0
  %156 = vmatpush1.msra.mxu0 %v124
  %157 = vmatprep.subr.mxu0 0.0
  %158 = vmatpush1.msra.mxu0 %v125
  %159 = vmatprep.subr.mxu0 0.0
  %160 = vmatpush1.msra.mxu0 %v126
  %161 = vmatprep.subr.mxu0 0.0
  %162 = vmatpush1.msra.mxu0 %v127
  %163 = vmatprep.subr.mxu0 0.0
  %164 = vmatpush1.msra.mxu0 %v128
  %165 = vmatprep.subr.mxu0 0.0
  %166 = vmatpush1.msra.mxu0 %v129
  %167 = vmatprep.subr.mxu0 0.0
  %168 = vmatpush1.msra.mxu0 %v130
  %169 = vmatprep.subr.mxu0 0.0
  %170 = vmatpush1.msra.mxu0 %v131
  %171 = vmatprep.subr.mxu0 0.0
  %172 = vmatpush1.msra.mxu0 0.0
  %173 = vmatprep.subr.mxu0 0.0
  %174 = vmatpush1.msra.mxu0 0.0
  %175 = vmatprep.subr.mxu0 0.0
  %176 = vmatpush1.msra.mxu0 0.0
  %177 = vmatprep.subr.mxu0 0.0
  %178 = vmatpush1.msra.mxu0 0.0
  %179 = vmatprep.subr.mxu0 0.0
  %180 = vmatpush1.msra.mxu0 0.0
  %181 = vmatprep.subr.mxu0 0.0
  %182 = vmatpush1.msra.mxu0 0.0
  %183 = vmatprep.subr.mxu0 0.0
  %184 = vmatpush1.msra.mxu0 0.0
  %185 = vmatprep.subr.mxu0 0.0
  %186 = vmatpush1.msra.mxu0 0.0
  %187 = vmatprep.subr.mxu0 0.0
  %188 = vmatpush1.msra.mxu0 0.0
  %189 = vmatprep.subr.mxu0 0.0
  %190 = vmatpush1.msra.mxu0 0.0
  %191 = vmatprep.subr.mxu0 0.0
  %192 = vmatpush1.msra.mxu0 0.0
  %193 = vmatprep.subr.mxu0 0.0
  %194 = vmatpush1.msra.mxu0 0.0
  %195 = vmatprep.subr.mxu0 0.0
  %196 = vmatpush1.msra.mxu0 0.0
  %197 = vmatprep.subr.mxu0 0.0
  %198 = vmatpush1.msra.mxu0 0.0
  %199 = vmatprep.subr.mxu0 0.0
  %200 = vmatpush1.msra.mxu0 0.0
  %201 = vmatprep.subr.mxu0 0.0
  %202 = vmatpush1.msra.mxu0 0.0
  %203 = vmatprep.mubr.f32.mxu0 0.0
  %204 = vmatmul.mubr.f32.gmra.mrb[0].mxu0 %v115
  %v205 = vpop.f32.mrb[0].mxu0
  %v206 = vadd.f32 %v137, %v205
  %v207 = vpop.f32.mrb[0].mxu0
  %208 = vdwg.mxu0
  %vm209 = vcmp.ge.f32.partialorder %v206, 0.0
  %v210 = vmul.f32 %v206, 0.01
  %v211 = vsel %vm209, %v206, %v210
  %v212 = vld [vmem:[%s5] sm:$0xff]
  %v213 = vld [vmem:[%s5 + $0x8] sm:$0xff]
  %v214 = vld [vmem:[%s5 + $0x10] sm:$0xff]
  %v215 = vld [vmem:[%s5 + $0x18] sm:$0xff]
  %v216 = vld [vmem:[%s5 + $0x20] sm:$0xff]
  %v217 = vld [vmem:[%s5 + $0x28] sm:$0xff]
  %v218 = vld [vmem:[%s5 + $0x30] sm:$0xff]
  %v219 = vld [vmem:[%s5 + $0x38] sm:$0xff]
  %v220 = vld [vmem:[#allocation2] sm:$0x1]
  %v222 = vlaneseq
  %v223 = vshrl.u32 %v222, 7
  %v224 = vsub.s32 0, %v223
  %v225 = vrot.slane %v220, %v224
  %v228 = vsel %vm69, %v211, 0
  %230 = vmatprep.subr.mxu0 0.0
  %231 = vmatpush1.msra.mxu0 %v212
  %232 = vmatprep.subr.mxu0 0.0
  %233 = vmatpush1.msra.mxu0 %v213
  %234 = vmatprep.subr.mxu0 0.0
  %235 = vmatpush1.msra.mxu0 %v214
  %236 = vmatprep.subr.mxu0 0.0
  %237 = vmatpush1.msra.mxu0 %v215
  %238 = vmatprep.subr.mxu0 0.0
  %239 = vmatpush1.msra.mxu0 %v216
  %240 = vmatprep.subr.mxu0 0.0
  %241 = vmatpush1.msra.mxu0 %v217
  %242 = vmatprep.subr.mxu0 0.0
  %243 = vmatpush1.msra.mxu0 %v218
  %244 = vmatprep.subr.mxu0 0.0
  %245 = vmatpush1.msra.mxu0 %v219
  %246 = vmatprep.subr.mxu0 0.0
  %247 = vmatpush1.msra.mxu0 0.0
  %248 = vmatprep.subr.mxu0 0.0
  %249 = vmatpush1.msra.mxu0 0.0
  %250 = vmatprep.subr.mxu0 0.0
  %251 = vmatpush1.msra.mxu0 0.0
  %252 = vmatprep.subr.mxu0 0.0
  %253 = vmatpush1.msra.mxu0 0.0
  %254 = vmatprep.subr.mxu0 0.0
  %255 = vmatpush1.msra.mxu0 0.0
  %256 = vmatprep.subr.mxu0 0.0
  %257 = vmatpush1.msra.mxu0 0.0
  %258 = vmatprep.subr.mxu0 0.0
  %259 = vmatpush1.msra.mxu0 0.0
  %260 = vmatprep.subr.mxu0 0.0
  %261 = vmatpush1.msra.mxu0 0.0
  %262 = vmatprep.subr.mxu0 0.0
  %263 = vmatpush1.msra.mxu0 0.0
  %264 = vmatprep.subr.mxu0 0.0
  %265 = vmatpush1.msra.mxu0 0.0
  %266 = vmatprep.subr.mxu0 0.0
  %267 = vmatpush1.msra.mxu0 0.0
  %268 = vmatprep.subr.mxu0 0.0
  %269 = vmatpush1.msra.mxu0 0.0
  %270 = vmatprep.subr.mxu0 0.0
  %271 = vmatpush1.msra.mxu0 0.0
  %272 = vmatprep.subr.mxu0 0.0
  %273 = vmatpush1.msra.mxu0 0.0
  %274 = vmatprep.subr.mxu0 0.0
  %275 = vmatpush1.msra.mxu0 0.0
  %276 = vmatprep.subr.mxu0 0.0
  %277 = vmatpush1.msra.mxu0 0.0
  %278 = vmatprep.subr.mxu0 0.0
  %279 = vmatpush1.msra.mxu0 0.0
  %280 = vmatprep.subr.mxu0 0.0
  %281 = vmatpush1.msra.mxu0 0.0
  %282 = vmatprep.subr.mxu0 0.0
  %283 = vmatpush1.msra.mxu0 0.0
  %284 = vmatprep.subr.mxu0 0.0
  %285 = vmatpush1.msra.mxu0 0.0
  %286 = vmatprep.subr.mxu0 0.0
  %287 = vmatpush1.msra.mxu0 0.0
  %288 = vmatprep.subr.mxu0 0.0
  %289 = vmatpush1.msra.mxu0 0.0
  %290 = vmatprep.subr.mxu0 0.0
  %291 = vmatpush1.msra.mxu0 0.0
  %292 = vmatprep.subr.mxu0 0.0
  %293 = vmatpush1.msra.mxu0 0.0
  %294 = vmatprep.mubr.f32.mxu0 0.0
  %295 = vmatmul.mubr.f32.gmra.mrb[0].mxu0 %v228
  %v296 = vpop.f32.mrb[0].mxu0
  %v297 = vadd.f32 %v225, %v296
  %v298 = vpop.f32.mrb[0].mxu0
  %299 = vdwg.mxu0
  %vm300 = vcmp.ge.f32.partialorder %v297, 0.0
  %v301 = vmul.f32 %v297, 0.01
  %v302 = vsel %vm300, %v297, %v301
  %vm303 = vcmask 7168
  %304 = vst.msk [vmem:[%s7] sm:$0xff] %vm303, %v302
  // Predicated region
  $region30: #{tpu_custom_call.1} parent=0 // pred_check
    _
  $region31: #{tpu_custom_call.1} parent=0 // pred_check_branch
    %306 = sbr.rel (0) target = $region33
  $region32: #{tpu_custom_call.1} parent=0 // pred_region
    _
  $region33: #{tpu_custom_call.1} parent=0 // pred_fallthru
    _
  // Predicated region
  $region34: #{tpu_custom_call.1} parent=0 // pred_check
    _
  $region35: #{tpu_custom_call.1} parent=0 // pred_check_branch
    %308 = sbr.rel (0) target = $region37
  $region36: #{tpu_custom_call.1} parent=0 // pred_region
    _
  $region37: #{tpu_custom_call.1} parent=0 // pred_fallthru
    _

</llo_original>
